<compile_context>
chip_gen: v6e
topology: v6e:2x2x1
jax: 0.10.0
libtpu: 0.0.40
codegen_flags: <defaults>
</compile_context>

<pallas_src>
import functools

import jax
import jax.numpy as jnp
from jax.experimental import pallas as pl
from jax.experimental.pallas import tpu as pltpu


_VMEM_LIMIT_BYTES = 32 * 1024 * 1024     # safe scoped-VMEM request on v5e/v6e/v7x
_BLOCK_BYTE_TARGET = 8 * 1024 * 1024     # in+out bytes per grid step (pre double-buffer)


def _cat_inner_product_kernel(*refs, num_fields, embed_dim):
    """refs = (x_0, ..., x_{n-1}, o).

    x_i : (TB, E)      one field's embeddings for this batch tile.
    o   : (TB, P*3E)   flat per-batch output row; pair k occupies lanes
                       [k*3E, (k+1)*3E) laid out as [p | q | p*q].
    """
    n, E = num_fields, embed_dim
    x_refs = refs[:n]
    o_ref = refs[n]
    lane_aligned = (E % 128 == 0)

    pair = 0
    for i in range(n - 1):
        for j in range(i + 1, n):
            p = x_refs[i][...]            # (TB, E) VMEM load
            q = x_refs[j][...]            # (TB, E) VMEM load
            base = pair * 3 * E
            if lane_aligned:
                # 128-aligned offsets and widths -> dense, unmasked stores.
                o_ref[:, base:base + E] = p
                o_ref[:, base + E:base + 2 * E] = q
                o_ref[:, base + 2 * E:base + 3 * E] = p * q
            else:
                # Assemble the 3E-wide pair row in vregs (lane-axis concat,
                # XLU work off the store slot) and issue ONE wider store
                # instead of three narrow masked stores.
                row = jnp.concatenate([p, q, p * q], axis=-1)   # (TB, 3E)
                o_ref[:, base:base + 3 * E] = row
            pair += 1


def cat_inner_product(embed_list):
    """Pallas implementation of CatInnerProductLayer.forward.

    embed_list: list of n arrays, each (B, 1, E) (or (B, E)).
    returns:    (B, P, 3*E) with P = n*(n-1)/2, = cat([p, q, p*q], dim=2).
    """
    n = len(embed_list)
    assert n >= 2, "CatInnerProductLayer needs at least two fields"

    B = embed_list[0].shape[0]
    E = embed_list[0].shape[-1]
    dtype = embed_list[0].dtype
    P = n * (n - 1) // 2

    # Free, row-major reshapes only: (B, 1, E) -> (B, E).  No wrapper concat.
    xs = [e.reshape(B, E) for e in embed_list]

    itemsize = jnp.dtype(dtype).itemsize
    bytes_per_row = (n * E + 3 * P * E) * itemsize      # in + out bytes per batch row

    # A minimal 8-row block, double-buffered, must comfortably fit the VMEM
    # budget; otherwise the pair axis would need to be split as well.
    # TODO(synk): add a P-axis split fallback for very large n*E payloads.
    assert 4 * 8 * bytes_per_row <= _VMEM_LIMIT_BYTES, (
        "per-batch payload too large for a single VMEM block; split the pair axis"
    )

    # Block size: ~8 MiB of in+out per grid step, but keep >= ~8 grid steps so
    # pipelining has work to overlap and v7x can shard across its 2 TCs; tb is
    # a multiple of 8 (or == B) for dense sublane packing / the (8,128) rule.
    tb = max(1, _BLOCK_BYTE_TARGET // bytes_per_row)
    tb = min(tb, max(1, pl.cdiv(B, 8)))
    tb = min(tb, B)
    if tb != B:
        tb = min(B, max(8, (tb // 8) * 8))
    grid = (pl.cdiv(B, tb),)

    kernel = functools.partial(
        _cat_inner_product_kernel, num_fields=n, embed_dim=E
    )

    out_flat = pl.pallas_call(
        kernel,
        out_shape=jax.ShapeDtypeStruct((B, P * 3 * E), dtype),
        grid=grid,
        in_specs=[pl.BlockSpec((tb, E), lambda b: (b, 0)) for _ in range(n)],
        out_specs=pl.BlockSpec((tb, P * 3 * E), lambda b: (b, 0)),
        compiler_params=pltpu.CompilerParams(
            dimension_semantics=("parallel",),
            vmem_limit_bytes=_VMEM_LIMIT_BYTES,
        ),
    )(*xs)

    # Free row-major reshape back to the module's (B, P, 3E) output.
    return out_flat.reshape(B, P, 3 * E)


def _reference(embed_list):
    """Pure-JAX reference mirroring the PyTorch forward."""
    n = len(embed_list)
    row, col = [], []
    for i in range(n - 1):
        for j in range(i + 1, n):
            row.append(i)
            col.append(j)
    el = [e.reshape(e.shape[0], 1, e.shape[-1]) for e in embed_list]
    p = jnp.concatenate([el[idx] for idx in row], axis=1)
    q = jnp.concatenate([el[idx] for idx in col], axis=1)
    return jnp.concatenate([p, q, p * q], axis=2)


if __name__ == "__main__":
    # Case 1: small PIN-like shapes, E not a multiple of 128 (lane-concat
    # store path) and B not a multiple of the block size (padded tail block).
    B, num_fields, E = 18, 4, 32
    keys = jax.random.split(jax.random.PRNGKey(0), num_fields)
    embed_list = [
        jax.random.normal(keys[f], (B, 1, E), dtype=jnp.float32)
        for f in range(num_fields)
    ]
    out = jax.block_until_ready(cat_inner_product(embed_list))
    ref = _reference(embed_list)
    P = num_fields * (num_fields - 1) // 2
    assert out.shape == (B, P, 3 * E), out.shape
    assert jnp.allclose(out, ref, atol=1e-6, rtol=1e-6), "mismatch vs reference (case 1)"

    # Case 2: lane-aligned embedding dim (E=128): dense unmasked store path.
    B2, num_fields2, E2 = 8, 5, 128
    keys2 = jax.random.split(jax.random.PRNGKey(1), num_fields2)
    embed_list2 = [
        jax.random.normal(keys2[f], (B2, 1, E2), dtype=jnp.float32)
        for f in range(num_fields2)
    ]
    out2 = jax.block_until_ready(cat_inner_product(embed_list2))
    ref2 = _reference(embed_list2)
    P2 = num_fields2 * (num_fields2 - 1) // 2
    assert out2.shape == (B2, P2, 3 * E2), out2.shape
    assert jnp.allclose(out2, ref2, atol=1e-6, rtol=1e-6), "mismatch vs reference (case 2)"

    print("KERNEL_OK")
</pallas_src>

<mosaic_0001>
module attributes {stable_mosaic.version = 11 : i64} {
  func.func @_cat_inner_product_kernel(%arg0: i32, %arg1: memref<8x32xf32, #tpu.memory_space<vmem>>, %arg2: memref<8x32xf32, #tpu.memory_space<vmem>>, %arg3: memref<8x32xf32, #tpu.memory_space<vmem>>, %arg4: memref<8x32xf32, #tpu.memory_space<vmem>>, %arg5: memref<8x576xf32, #tpu.memory_space<vmem>>) attributes {dimension_semantics = [#tpu.dimension_semantics<parallel>], iteration_bounds = array<i64: 3>, scalar_prefetch = 0 : i64, scratch_operands = 0 : i64, tpu.core_type = #tpu.core_type<tc>, window_params = [{transform_indices = @transform_0, window_bounds = array<i64: 8, 32>}, {transform_indices = @transform_1, window_bounds = array<i64: 8, 32>}, {transform_indices = @transform_2, window_bounds = array<i64: 8, 32>}, {transform_indices = @transform_3, window_bounds = array<i64: 8, 32>}, {transform_indices = @transform_4, window_bounds = array<i64: 8, 576>}]} {
    %c0 = arith.constant 0 : index
    %c0_0 = arith.constant 0 : index
    %0 = vector.load %arg1[%c0, %c0_0] : memref<8x32xf32, #tpu.memory_space<vmem>>, vector<8x32xf32>
    %c0_1 = arith.constant 0 : index
    %c0_2 = arith.constant 0 : index
    %1 = vector.load %arg2[%c0_1, %c0_2] : memref<8x32xf32, #tpu.memory_space<vmem>>, vector<8x32xf32>
    %2 = arith.mulf %0, %1 : vector<8x32xf32>
    %3 = tpu.concatenate %0, %1, %2 in 1 : vector<8x32xf32>, vector<8x32xf32>, vector<8x32xf32> -> vector<8x96xf32>
    %c0_3 = arith.constant 0 : index
    %c0_4 = arith.constant 0 : index
    %4 = vector.load %arg5[%c0_3, %c0_4] : memref<8x576xf32, #tpu.memory_space<vmem>>, vector<8x96xf32>
    tpu.vector_store %arg5[%c0_3, %c0_4], %3 {strides = array<i32>} : memref<8x576xf32, #tpu.memory_space<vmem>>, vector<8x96xf32>,
    %c0_5 = arith.constant 0 : index
    %c0_6 = arith.constant 0 : index
    %5 = vector.load %arg1[%c0_5, %c0_6] : memref<8x32xf32, #tpu.memory_space<vmem>>, vector<8x32xf32>
    %c0_7 = arith.constant 0 : index
    %c0_8 = arith.constant 0 : index
    %6 = vector.load %arg3[%c0_7, %c0_8] : memref<8x32xf32, #tpu.memory_space<vmem>>, vector<8x32xf32>
    %7 = arith.mulf %5, %6 : vector<8x32xf32>
    %8 = tpu.concatenate %5, %6, %7 in 1 : vector<8x32xf32>, vector<8x32xf32>, vector<8x32xf32> -> vector<8x96xf32>
    %c0_9 = arith.constant 0 : index
    %c96 = arith.constant 96 : index
    %9 = vector.load %arg5[%c0_9, %c96] : memref<8x576xf32, #tpu.memory_space<vmem>>, vector<8x96xf32>
    tpu.vector_store %arg5[%c0_9, %c96], %8 {strides = array<i32>} : memref<8x576xf32, #tpu.memory_space<vmem>>, vector<8x96xf32>,
    %c0_10 = arith.constant 0 : index
    %c0_11 = arith.constant 0 : index
    %10 = vector.load %arg1[%c0_10, %c0_11] : memref<8x32xf32, #tpu.memory_space<vmem>>, vector<8x32xf32>
    %c0_12 = arith.constant 0 : index
    %c0_13 = arith.constant 0 : index
    %11 = vector.load %arg4[%c0_12, %c0_13] : memref<8x32xf32, #tpu.memory_space<vmem>>, vector<8x32xf32>
    %12 = arith.mulf %10, %11 : vector<8x32xf32>
    %13 = tpu.concatenate %10, %11, %12 in 1 : vector<8x32xf32>, vector<8x32xf32>, vector<8x32xf32> -> vector<8x96xf32>
    %c0_14 = arith.constant 0 : index
    %c192 = arith.constant 192 : index
    %14 = vector.load %arg5[%c0_14, %c192] : memref<8x576xf32, #tpu.memory_space<vmem>>, vector<8x96xf32>
    tpu.vector_store %arg5[%c0_14, %c192], %13 {strides = array<i32>} : memref<8x576xf32, #tpu.memory_space<vmem>>, vector<8x96xf32>,
    %c0_15 = arith.constant 0 : index
    %c0_16 = arith.constant 0 : index
    %15 = vector.load %arg2[%c0_15, %c0_16] : memref<8x32xf32, #tpu.memory_space<vmem>>, vector<8x32xf32>
    %c0_17 = arith.constant 0 : index
    %c0_18 = arith.constant 0 : index
    %16 = vector.load %arg3[%c0_17, %c0_18] : memref<8x32xf32, #tpu.memory_space<vmem>>, vector<8x32xf32>
    %17 = arith.mulf %15, %16 : vector<8x32xf32>
    %18 = tpu.concatenate %15, %16, %17 in 1 : vector<8x32xf32>, vector<8x32xf32>, vector<8x32xf32> -> vector<8x96xf32>
    %c0_19 = arith.constant 0 : index
    %c288 = arith.constant 288 : index
    %19 = vector.load %arg5[%c0_19, %c288] : memref<8x576xf32, #tpu.memory_space<vmem>>, vector<8x96xf32>
    tpu.vector_store %arg5[%c0_19, %c288], %18 {strides = array<i32>} : memref<8x576xf32, #tpu.memory_space<vmem>>, vector<8x96xf32>,
    %c0_20 = arith.constant 0 : index
    %c0_21 = arith.constant 0 : index
    %20 = vector.load %arg2[%c0_20, %c0_21] : memref<8x32xf32, #tpu.memory_space<vmem>>, vector<8x32xf32>
    %c0_22 = arith.constant 0 : index
    %c0_23 = arith.constant 0 : index
    %21 = vector.load %arg4[%c0_22, %c0_23] : memref<8x32xf32, #tpu.memory_space<vmem>>, vector<8x32xf32>
    %22 = arith.mulf %20, %21 : vector<8x32xf32>
    %23 = tpu.concatenate %20, %21, %22 in 1 : vector<8x32xf32>, vector<8x32xf32>, vector<8x32xf32> -> vector<8x96xf32>
    %c0_24 = arith.constant 0 : index
    %c384 = arith.constant 384 : index
    %24 = vector.load %arg5[%c0_24, %c384] : memref<8x576xf32, #tpu.memory_space<vmem>>, vector<8x96xf32>
    tpu.vector_store %arg5[%c0_24, %c384], %23 {strides = array<i32>} : memref<8x576xf32, #tpu.memory_space<vmem>>, vector<8x96xf32>,
    %c0_25 = arith.constant 0 : index
    %c0_26 = arith.constant 0 : index
    %25 = vector.load %arg3[%c0_25, %c0_26] : memref<8x32xf32, #tpu.memory_space<vmem>>, vector<8x32xf32>
    %c0_27 = arith.constant 0 : index
    %c0_28 = arith.constant 0 : index
    %26 = vector.load %arg4[%c0_27, %c0_28] : memref<8x32xf32, #tpu.memory_space<vmem>>, vector<8x32xf32>
    %27 = arith.mulf %25, %26 : vector<8x32xf32>
    %28 = tpu.concatenate %25, %26, %27 in 1 : vector<8x32xf32>, vector<8x32xf32>, vector<8x32xf32> -> vector<8x96xf32>
    %c0_29 = arith.constant 0 : index
    %c480 = arith.constant 480 : index
    %29 = vector.load %arg5[%c0_29, %c480] : memref<8x576xf32, #tpu.memory_space<vmem>>, vector<8x96xf32>
    tpu.vector_store %arg5[%c0_29, %c480], %28 {strides = array<i32>} : memref<8x576xf32, #tpu.memory_space<vmem>>, vector<8x96xf32>,
    return
  }
  func.func @transform_0(%arg0: i32) -> (i32, i32) {
    %c0_i32 = arith.constant 0 : i32
    %c0_i32_0 = arith.constant 0 : i32
    return %arg0, %c0_i32 : i32, i32
  }
  func.func @transform_1(%arg0: i32) -> (i32, i32) {
    %c0_i32 = arith.constant 0 : i32
    %c0_i32_0 = arith.constant 0 : i32
    return %arg0, %c0_i32 : i32, i32
  }
  func.func @transform_2(%arg0: i32) -> (i32, i32) {
    %c0_i32 = arith.constant 0 : i32
    %c0_i32_0 = arith.constant 0 : i32
    return %arg0, %c0_i32 : i32, i32
  }
  func.func @transform_3(%arg0: i32) -> (i32, i32) {
    %c0_i32 = arith.constant 0 : i32
    %c0_i32_0 = arith.constant 0 : i32
    return %arg0, %c0_i32 : i32, i32
  }
  func.func @transform_4(%arg0: i32) -> (i32, i32) {
    %c0_i32 = arith.constant 0 : i32
    %c0_i32_0 = arith.constant 0 : i32
    return %arg0, %c0_i32 : i32, i32
  }
}

</mosaic_0001>

<llo_original>
// kernel: tpu_custom_call.1
$region0: #{tpu_custom_call.1}
  #allocation0 [shape = 'u32[]', space=smem, size = 0x4, offset = 0x4, fixed_abs, tag = 'smem constant byte address 0x4 - core index']
  #allocation1 [shape = 'u32[144,128]{1,0:T(1,128)}', space=vmem, size = 0x12000, scoped, tag = 'internal scratch']
  %s0 = inlined_call_operand.hbm [shape: f32[18,32], index: 0, kind: input, shape index: {}]
  %s1 = inlined_call_operand.hbm [shape: f32[18,32], index: 1, kind: input, shape index: {}]
  %s2 = inlined_call_operand.hbm [shape: f32[18,32], index: 2, kind: input, shape index: {}]
  %s3 = inlined_call_operand.hbm [shape: f32[18,32], index: 3, kind: input, shape index: {}]
  %s4 = inlined_call_operand.hbm [shape: f32[18,576], index: 4, kind: output, shape index: {}]
  %s5 = sld [smem:[#allocation0]]
  $region65: #{tpu_custom_call.1} parent=0
    _
  %s7 = ssub.s32 1, %s5
  %s8 = scalar_select 0, %s7, %s5
  $region1: #{tpu_custom_call.1} parent=0
    #allocation2 [shape = 'u8[8192]{0}', space=vmem, size = 0x2000, scoped, tag = 'input window, operand 0']
    #allocation3 [shape = 's32[2]{0}', space=sflag, size = 0x8, scoped, tag = 'scoped memory for tpu_custom_call.1']
    #allocation4 [shape = 's32[2]{0}', space=sflag, size = 0x8, scoped, tag = 'scoped memory for tpu_custom_call.1']
    #allocation5 [shape = 'u8[8192]{0}', space=vmem, size = 0x2000, scoped, tag = 'input window, operand 1']
    #allocation6 [shape = 's32[2]{0}', space=sflag, size = 0x8, scoped, tag = 'scoped memory for tpu_custom_call.1']
    #allocation7 [shape = 'u8[8192]{0}', space=vmem, size = 0x2000, scoped, tag = 'input window, operand 2']
    #allocation8 [shape = 'u8[8192]{0}', space=vmem, size = 0x2000, scoped, tag = 'input window, operand 3']
    #allocation9 [shape = 's32[2]{0}', space=sflag, size = 0x8, scoped, tag = 'scoped memory for tpu_custom_call.1']
    #allocation10 [shape = 'u8[40960]{0}', space=vmem, size = 0xa000, scoped, tag = 'output window, operand 0']
    %9 = vsyncpa [#allocation3], 0
    %s10 = scalar_lea.sflag [#allocation3], 1
    %11 = vsyncpa %s10, 0
    %12 = vsyncpa [#allocation6], 0
    %s13 = scalar_lea.sflag [#allocation6], 1
    %14 = vsyncpa %s13, 0
    %15 = vsyncpa [#allocation9], 0
    %s16 = scalar_lea.sflag [#allocation9], 1
    %17 = vsyncpa %s16, 0
    %18 = vsyncpa [#allocation4], 0
    %s19 = scalar_lea.sflag [#allocation4], 1
    %20 = vsyncpa %s19, 0
    loop: start=0, step=1, limit=5
    $region2: #{tpu_custom_call.1} parent=1 // loop_pre_header
      _
    $region3: #{tpu_custom_call.1} parent=1 // loop_header
      %s22 = sphi 0, %s26
      %p23 = scmp.ge.s32.totalorder %s22, 5
      %s32 = sphi 0, %s34
      %s35 = sphi 0, %s32
      %s36 = sphi 0, %s35
      %s52 = sphi 0, %s36
      %s58 = sphi 0, %s60
      %s61 = sphi 0, %s58
      %s62 = sphi 0, %s61
      %s78 = sphi 0, %s62
      %s84 = sphi 0, %s86
      %s87 = sphi 0, %s84
      %s88 = sphi 0, %s87
      %s104 = sphi 0, %s88
      %s110 = sphi 0, %s112
      %s113 = sphi 0, %s110
      %s114 = sphi 0, %s113
      %s130 = sphi 0, %s114
      %s136 = sphi 0, %s138
      %s139 = sphi 0, %s136
      %s140 = sphi 0, %s139
      %s156 = sphi 0, %s140
    $region4: #{tpu_custom_call.1} parent=1 // loop_header_branch
      %25 = sbr.rel (%p23) target = $region8
    $region5: #{tpu_custom_call.1} parent=1 // loop_body
      %s27 = ssub.s32 %s22, 1
      %s28 = ssub.s32 %s22, 2
      %s29 = sadd.s32 %s22, 1
      %s30 = ssub.s32 %s22, %s29
      %p31 = scmp.eq.s32.totalorder %s30, 0
      %s33 = sadd.s32 %s32, 1
      %s34 = scalar_select %p31, %s32, %s33
      %p37 = pneg %p31
      %p38 = scmp.eq.s32.totalorder %s22, 2
      %p39 = por %p37, %p38
      %p40 = scmp.ne.s32.totalorder %s32, %s35
      %p41 = scmp.eq.s32.totalorder %s22, 0
      %p42 = por %p40, %p41
      %p43 = scmp.ne.s32.totalorder %s32, %s35
      %p44 = scmp.eq.s32.totalorder %s27, 2
      %p45 = por %p43, %p44
      %p46 = scmp.ne.s32.totalorder %s35, %s36
      %p47 = scmp.eq.s32.totalorder %s27, 0
      %p48 = por %p46, %p47
      %p49 = scmp.ne.s32.totalorder %s35, %s36
      %p50 = scmp.eq.s32.totalorder %s28, 2
      %p51 = por %p49, %p50
      %p53 = scmp.ne.s32.totalorder %s36, %s52
      %p54 = scmp.eq.s32.totalorder %s28, 0
      %p55 = por %p53, %p54
      %s56 = ssub.s32 %s22, %s29
      %p57 = scmp.eq.s32.totalorder %s56, 0
      %s59 = sadd.s32 %s58, 1
      %s60 = scalar_select %p57, %s58, %s59
      %p63 = pneg %p57
      %p64 = scmp.eq.s32.totalorder %s22, 2
      %p65 = por %p63, %p64
      %p66 = scmp.ne.s32.totalorder %s58, %s61
      %p67 = scmp.eq.s32.totalorder %s22, 0
      %p68 = por %p66, %p67
      %p69 = scmp.ne.s32.totalorder %s58, %s61
      %p70 = scmp.eq.s32.totalorder %s27, 2
      %p71 = por %p69, %p70
      %p72 = scmp.ne.s32.totalorder %s61, %s62
      %p73 = scmp.eq.s32.totalorder %s27, 0
      %p74 = por %p72, %p73
      %p75 = scmp.ne.s32.totalorder %s61, %s62
      %p76 = scmp.eq.s32.totalorder %s28, 2
      %p77 = por %p75, %p76
      %p79 = scmp.ne.s32.totalorder %s62, %s78
      %p80 = scmp.eq.s32.totalorder %s28, 0
      %p81 = por %p79, %p80
      %s82 = ssub.s32 %s22, %s29
      %p83 = scmp.eq.s32.totalorder %s82, 0
      %s85 = sadd.s32 %s84, 1
      %s86 = scalar_select %p83, %s84, %s85
      %p89 = pneg %p83
      %p90 = scmp.eq.s32.totalorder %s22, 2
      %p91 = por %p89, %p90
      %p92 = scmp.ne.s32.totalorder %s84, %s87
      %p93 = scmp.eq.s32.totalorder %s22, 0
      %p94 = por %p92, %p93
      %p95 = scmp.ne.s32.totalorder %s84, %s87
      %p96 = scmp.eq.s32.totalorder %s27, 2
      %p97 = por %p95, %p96
      %p98 = scmp.ne.s32.totalorder %s87, %s88
      %p99 = scmp.eq.s32.totalorder %s27, 0
      %p100 = por %p98, %p99
      %p101 = scmp.ne.s32.totalorder %s87, %s88
      %p102 = scmp.eq.s32.totalorder %s28, 2
      %p103 = por %p101, %p102
      %p105 = scmp.ne.s32.totalorder %s88, %s104
      %p106 = scmp.eq.s32.totalorder %s28, 0
      %p107 = por %p105, %p106
      %s108 = ssub.s32 %s22, %s29
      %p109 = scmp.eq.s32.totalorder %s108, 0
      %s111 = sadd.s32 %s110, 1
      %s112 = scalar_select %p109, %s110, %s111
      %p115 = pneg %p109
      %p116 = scmp.eq.s32.totalorder %s22, 2
      %p117 = por %p115, %p116
      %p118 = scmp.ne.s32.totalorder %s110, %s113
      %p119 = scmp.eq.s32.totalorder %s22, 0
      %p120 = por %p118, %p119
      %p121 = scmp.ne.s32.totalorder %s110, %s113
      %p122 = scmp.eq.s32.totalorder %s27, 2
      %p123 = por %p121, %p122
      %p124 = scmp.ne.s32.totalorder %s113, %s114
      %p125 = scmp.eq.s32.totalorder %s27, 0
      %p126 = por %p124, %p125
      %p127 = scmp.ne.s32.totalorder %s113, %s114
      %p128 = scmp.eq.s32.totalorder %s28, 2
      %p129 = por %p127, %p128
      %p131 = scmp.ne.s32.totalorder %s114, %s130
      %p132 = scmp.eq.s32.totalorder %s28, 0
      %p133 = por %p131, %p132
      %s134 = ssub.s32 %s22, %s29
      %p135 = scmp.eq.s32.totalorder %s134, 0
      %s137 = sadd.s32 %s136, 1
      %s138 = scalar_select %p135, %s136, %s137
      %p141 = pneg %p135
      %p142 = scmp.eq.s32.totalorder %s22, 2
      %p143 = por %p141, %p142
      %p144 = scmp.ne.s32.totalorder %s136, %s139
      %p145 = scmp.eq.s32.totalorder %s22, 0
      %p146 = por %p144, %p145
      %p147 = scmp.ne.s32.totalorder %s136, %s139
      %p148 = scmp.eq.s32.totalorder %s27, 2
      %p149 = por %p147, %p148
      %p150 = scmp.ne.s32.totalorder %s139, %s140
      %p151 = scmp.eq.s32.totalorder %s27, 0
      %p152 = por %p150, %p151
      %p153 = scmp.ne.s32.totalorder %s139, %s140
      %p154 = scmp.eq.s32.totalorder %s28, 2
      %p155 = por %p153, %p154
      %p157 = scmp.ne.s32.totalorder %s140, %s156
      %p158 = scmp.eq.s32.totalorder %s28, 0
      %p159 = por %p157, %p158
      %p160 = scmp.le.s32.totalorder 1, %s22
      %p161 = scmp.lt.s32.totalorder %s22, 4
      %p162 = pnand %p160, %p161
      %p163 = pneg %p162
      // Predicated region
      $region9: #{tpu_custom_call.1} parent=5 // pred_check
        _
      $region10: #{tpu_custom_call.1} parent=5 // pred_check_branch
        %165 = sbr.rel (%p162) target = $region12
      $region11: #{tpu_custom_call.1} parent=5 // pred_region
        %s166 = ssub.s32 %s22, 1
      $region12: #{tpu_custom_call.1} parent=5 // pred_fallthru
        _
      %p167 = scmp.lt.s32.totalorder %s22, 3
      // Predicated region
      $region13: #{tpu_custom_call.1} parent=5 // pred_check
        %p168 = pneg %p167
      $region14: #{tpu_custom_call.1} parent=5 // pred_check_branch
        %170 = sbr.rel (%p168) target = $region16
      $region15: #{tpu_custom_call.1} parent=5 // pred_region
        // Predicated region
        $region17: #{tpu_custom_call.1} parent=15 // pred_check
          %p171 = pneg %p42
        $region18: #{tpu_custom_call.1} parent=15 // pred_check_branch
          %173 = sbr.rel (%p171) target = $region20
        $region19: #{tpu_custom_call.1} parent=15 // pred_region
          %s174 = sand.u32 %s32, 1
          %s175 = scalar_lea.sflag [#allocation3], %s174
          %s176 = sand.u32 %s32, 1
          %s177 = smul.addr %s176, 8
          %s178 = scalar_lea.vmem [#allocation2], %s177
          %s180 = ssub.s32 128, 128
          %181 = vsyncadd %s175, %s180
          %s182 = smul.addr %s22, 128
          %s183 = scalar_lea.hbm %s0, %s182
          %s185 = sshll.u32 %s178, 4
          %s186 = int_to_ptr.vmem [resolvable:$true] %s185
          %188 = dma.hbm_to_vmem [thread:$0]  %s183, 128, %s186, %s175
        $region20: #{tpu_custom_call.1} parent=15 // pred_fallthru
          _
        // Predicated region
        $region21: #{tpu_custom_call.1} parent=15 // pred_check
          %p189 = pneg %p68
        $region22: #{tpu_custom_call.1} parent=15 // pred_check_branch
          %191 = sbr.rel (%p189) target = $region24
        $region23: #{tpu_custom_call.1} parent=15 // pred_region
          %s192 = sand.u32 %s22, 1
          %s193 = scalar_lea.sflag [#allocation6], %s192
          %s194 = sand.u32 %s58, 1
          %s195 = smul.addr %s194, 8
          %s196 = scalar_lea.vmem [#allocation5], %s195
          %s198 = ssub.s32 128, 128
          %199 = vsyncadd %s193, %s198
          %s200 = smul.addr %s22, 128
          %s201 = scalar_lea.hbm %s1, %s200
          %s203 = sshll.u32 %s196, 4
          %s204 = int_to_ptr.vmem [resolvable:$true] %s203
          %206 = dma.hbm_to_vmem [thread:$0]  %s201, 128, %s204, %s193
        $region24: #{tpu_custom_call.1} parent=15 // pred_fallthru
          _
        // Predicated region
        $region25: #{tpu_custom_call.1} parent=15 // pred_check
          %p207 = pneg %p94
        $region26: #{tpu_custom_call.1} parent=15 // pred_check_branch
          %209 = sbr.rel (%p207) target = $region28
        $region27: #{tpu_custom_call.1} parent=15 // pred_region
          %s210 = sand.u32 %s22, 1
          %s211 = scalar_lea.sflag [#allocation6], %s210
          %s212 = sand.u32 %s84, 1
          %s213 = smul.addr %s212, 8
          %s214 = scalar_lea.vmem [#allocation7], %s213
          %s216 = ssub.s32 128, 128
          %217 = vsyncadd %s211, %s216
          %s218 = smul.addr %s22, 128
          %s219 = scalar_lea.hbm %s2, %s218
          %s221 = sshll.u32 %s214, 4
          %s222 = int_to_ptr.vmem [resolvable:$true] %s221
          %224 = dma.hbm_to_vmem [thread:$0]  %s219, 128, %s222, %s211
        $region28: #{tpu_custom_call.1} parent=15 // pred_fallthru
          _
        // Predicated region
        $region29: #{tpu_custom_call.1} parent=15 // pred_check
          %p225 = pneg %p120
        $region30: #{tpu_custom_call.1} parent=15 // pred_check_branch
          %227 = sbr.rel (%p225) target = $region32
        $region31: #{tpu_custom_call.1} parent=15 // pred_region
          %s228 = sand.u32 %s110, 1
          %s229 = scalar_lea.sflag [#allocation9], %s228
          %s230 = sand.u32 %s110, 1
          %s231 = smul.addr %s230, 8
          %s232 = scalar_lea.vmem [#allocation8], %s231
          %s234 = ssub.s32 128, 128
          %235 = vsyncadd %s229, %s234
          %s236 = smul.addr %s22, 128
          %s237 = scalar_lea.hbm %s3, %s236
          %s239 = sshll.u32 %s232, 4
          %s240 = int_to_ptr.vmem [resolvable:$true] %s239
          %242 = dma.hbm_to_vmem [thread:$0]  %s237, 128, %s240, %s229
        $region32: #{tpu_custom_call.1} parent=15 // pred_fallthru
          _
      $region16: #{tpu_custom_call.1} parent=5 // pred_fallthru
        _
      %p243 = scmp.le.s32.totalorder 1, %s22
      %p244 = scmp.lt.s32.totalorder %s22, 4
      %p245 = pnand %p243, %p244
      %p246 = pneg %p245
      // Predicated region
      $region33: #{tpu_custom_call.1} parent=5 // pred_check
        _
      $region34: #{tpu_custom_call.1} parent=5 // pred_check_branch
        %248 = sbr.rel (%p245) target = $region36
      $region35: #{tpu_custom_call.1} parent=5 // pred_region
        %s249 = ssub.s32 %s22, 1
        %s250 = sand.u32 %s35, 1
        %s251 = scalar_lea.sflag [#allocation3], %s250
        %s252 = sand.u32 %s35, 1
        %s253 = smul.addr %s252, 8
        %s254 = scalar_lea.vmem [#allocation2], %s253
        // Predicated region
        $region37: #{tpu_custom_call.1} parent=35 // pred_check
          %p255 = pneg %p48
        $region38: #{tpu_custom_call.1} parent=35 // pred_check_branch
          %257 = sbr.rel (%p255) target = $region40
        $region39: #{tpu_custom_call.1} parent=35 // pred_region
          %258 = dma.done %s251, 128
        $region40: #{tpu_custom_call.1} parent=35 // pred_fallthru
          _
        %s259 = sand.u32 %s27, 1
        %s260 = scalar_lea.sflag [#allocation6], %s259
        %s261 = sand.u32 %s61, 1
        %s262 = smul.addr %s261, 8
        %s263 = scalar_lea.vmem [#allocation5], %s262
        // Predicated region
        $region41: #{tpu_custom_call.1} parent=35 // pred_check
          %p264 = pneg %p74
        $region42: #{tpu_custom_call.1} parent=35 // pred_check_branch
          %266 = sbr.rel (%p264) target = $region44
        $region43: #{tpu_custom_call.1} parent=35 // pred_region
          %267 = dma.done %s260, 128
        $region44: #{tpu_custom_call.1} parent=35 // pred_fallthru
          _
        %s268 = sand.u32 %s27, 1
        %s269 = scalar_lea.sflag [#allocation6], %s268
        %s270 = sand.u32 %s87, 1
        %s271 = smul.addr %s270, 8
        %s272 = scalar_lea.vmem [#allocation7], %s271
        // Predicated region
        $region45: #{tpu_custom_call.1} parent=35 // pred_check
          %p273 = pneg %p100
        $region46: #{tpu_custom_call.1} parent=35 // pred_check_branch
          %275 = sbr.rel (%p273) target = $region48
        $region47: #{tpu_custom_call.1} parent=35 // pred_region
          %276 = dma.done %s269, 128
        $region48: #{tpu_custom_call.1} parent=35 // pred_fallthru
          _
        %s277 = sand.u32 %s113, 1
        %s278 = scalar_lea.sflag [#allocation9], %s277
        %s279 = sand.u32 %s113, 1
        %s280 = smul.addr %s279, 8
        %s281 = scalar_lea.vmem [#allocation8], %s280
        // Predicated region
        $region49: #{tpu_custom_call.1} parent=35 // pred_check
          %p282 = pneg %p126
        $region50: #{tpu_custom_call.1} parent=35 // pred_check_branch
          %284 = sbr.rel (%p282) target = $region52
        $region51: #{tpu_custom_call.1} parent=35 // pred_region
          %285 = dma.done %s278, 128
        $region52: #{tpu_custom_call.1} parent=35 // pred_fallthru
          _
        %s286 = sand.u32 %s35, 1
        %s287 = scalar_lea.sflag [#allocation3], %s286
        %s288 = sand.u32 %s35, 1
        %s289 = smul.addr %s288, 8
        %s290 = scalar_lea.vmem [#allocation2], %s289
        %p291 = pneg %p48
        %p292 = pneg %p45
        %s293 = sand.u32 %s27, 1
        %s294 = scalar_lea.sflag [#allocation6], %s293
        %s295 = sand.u32 %s61, 1
        %s296 = smul.addr %s295, 8
        %s297 = scalar_lea.vmem [#allocation5], %s296
        %p298 = pneg %p74
        %p299 = pneg %p71
        %s300 = sand.u32 %s27, 1
        %s301 = scalar_lea.sflag [#allocation6], %s300
        %s302 = sand.u32 %s87, 1
        %s303 = smul.addr %s302, 8
        %s304 = scalar_lea.vmem [#allocation7], %s303
        %p305 = pneg %p100
        %p306 = pneg %p97
        %s307 = sand.u32 %s113, 1
        %s308 = scalar_lea.sflag [#allocation9], %s307
        %s309 = sand.u32 %s113, 1
        %s310 = smul.addr %s309, 8
        %s311 = scalar_lea.vmem [#allocation8], %s310
        %p312 = pneg %p126
        %p313 = pneg %p123
        %p314 = pneg %p152
        %p315 = pneg %p149
        %s316 = sand.u32 %s139, 1
        %s317 = scalar_lea.sflag [#allocation4], %s316
        %s318 = sand.u32 %s139, 1
        %s319 = smul.addr %s318, 40
        %s320 = scalar_lea.vmem [#allocation10], %s319
        %v321 = vld [vmem:[%s254] sm:$0xff]
        %v322 = vld [vmem:[%s263] sm:$0xff]
        %v323 = vmul.f32 %v321, %v322
        %325 = vrot.lane.b32.xlu0 %v322, 32
        %v326 = vpop.permute.xlu0 %325
        %329 = vrot.lane.b32.xlu0 %v323, 64
        %v330 = vpop.permute.xlu0 %329
        %vm332 = vcmask 261120
        %v333 = vsel %vm332, %v321, %v326
        %vm334 = vcmask 523264
        %v335 = vsel %vm334, %v333, %v330
        %vm336 = vcmask 785408
        %337 = vst.msk [vmem:[%s320] sm:$0xff] %vm336, %v335
        %v338 = vld [vmem:[%s254] sm:$0xff]
        %v339 = vld [vmem:[%s272] sm:$0xff]
        %v340 = vmul.f32 %v338, %v339
        %342 = vrot.lane.b32.xlu0 %v339, 32
        %v343 = vpop.permute.xlu0 %342
        %346 = vrot.lane.b32.xlu0 %v340, 64
        %v347 = vpop.permute.xlu0 %346
        %v349 = vsel %vm332, %v338, %v343
        %v350 = vsel %vm334, %v349, %v347
        %352 = vrot.lane.b32.xlu0 %v350, 96
        %v353 = vpop.permute.xlu0 %352
        %vm355 = vcmask 1048320
        %356 = vst.msk [vmem:[%s320] sm:$0xff] %vm355, %v353
        %357 = vst.msk [vmem:[%s320 + $0x8] sm:$0xff] %vm334, %v353
        %v358 = vld [vmem:[%s254] sm:$0xff]
        %v359 = vld [vmem:[%s281] sm:$0xff]
        %v360 = vmul.f32 %v358, %v359
        %362 = vrot.lane.b32.xlu0 %v359, 32
        %v363 = vpop.permute.xlu0 %362
        %366 = vrot.lane.b32.xlu0 %v360, 64
        %v367 = vpop.permute.xlu0 %366
        %v369 = vsel %vm332, %v358, %v363
        %v370 = vsel %vm334, %v369, %v367
        %372 = vrot.lane.b32.xlu0 %v370, 64
        %v373 = vpop.permute.xlu0 %372
        %vm375 = vcmask 1048064
        %376 = vst.msk [vmem:[%s320 + $0x8] sm:$0xff] %vm375, %v373
        %377 = vst.msk [vmem:[%s320 + $0x10] sm:$0xff] %vm332, %v373
        %v378 = vld [vmem:[%s263] sm:$0xff]
        %v379 = vld [vmem:[%s272] sm:$0xff]
        %v380 = vmul.f32 %v378, %v379
        %382 = vrot.lane.b32.xlu0 %v379, 32
        %v383 = vpop.permute.xlu0 %382
        %386 = vrot.lane.b32.xlu0 %v380, 64
        %v387 = vpop.permute.xlu0 %386
        %v389 = vsel %vm332, %v378, %v383
        %v390 = vsel %vm334, %v389, %v387
        %392 = vrot.lane.b32.xlu0 %v390, 32
        %v393 = vpop.permute.xlu0 %392
        %vm395 = vcmask 1047808
        %396 = vst.msk [vmem:[%s320 + $0x10] sm:$0xff] %vm395, %v393
        %v397 = vld [vmem:[%s263] sm:$0xff]
        %v398 = vld [vmem:[%s281] sm:$0xff]
        %v399 = vmul.f32 %v397, %v398
        %401 = vrot.lane.b32.xlu0 %v398, 32
        %v402 = vpop.permute.xlu0 %401
        %405 = vrot.lane.b32.xlu0 %v399, 64
        %v406 = vpop.permute.xlu0 %405
        %v408 = vsel %vm332, %v397, %v402
        %v409 = vsel %vm334, %v408, %v406
        %410 = vst.msk [vmem:[%s320 + $0x18] sm:$0xff] %vm336, %v409
        %v411 = vld [vmem:[%s272] sm:$0xff]
        %v412 = vld [vmem:[%s281] sm:$0xff]
        %v413 = vmul.f32 %v411, %v412
        %415 = vrot.lane.b32.xlu0 %v412, 32
        %v416 = vpop.permute.xlu0 %415
        %419 = vrot.lane.b32.xlu0 %v413, 64
        %v420 = vpop.permute.xlu0 %419
        %v422 = vsel %vm332, %v411, %v416
        %v423 = vsel %vm334, %v422, %v420
        %425 = vrot.lane.b32.xlu0 %v423, 96
        %v426 = vpop.permute.xlu0 %425
        %428 = vst.msk [vmem:[%s320 + $0x18] sm:$0xff] %vm355, %v426
        %429 = vst.msk [vmem:[%s320 + $0x20] sm:$0xff] %vm334, %v426
        %s430 = sand.u32 %s139, 1
        %s431 = scalar_lea.sflag [#allocation4], %s430
        %s432 = sand.u32 %s139, 1
        %s433 = smul.addr %s432, 40
        %s434 = scalar_lea.vmem [#allocation10], %s433
        // Predicated region
        $region53: #{tpu_custom_call.1} parent=35 // pred_check
          %p435 = pneg %p149
        $region54: #{tpu_custom_call.1} parent=35 // pred_check_branch
          %437 = sbr.rel (%p435) target = $region56
        $region55: #{tpu_custom_call.1} parent=35 // pred_region
          %s439 = ssub.s32 640, 640
          %440 = vsyncadd %s431, %s439
          %s441 = smul.addr %s27, 5
          %s442 = smul.addr %s441, 128
          %s443 = scalar_lea.hbm %s4, %s442
          %s445 = sshll.u32 %s434, 4
          %s446 = int_to_ptr.vmem [resolvable:$true] %s445
          %448 = dma.vmem_to_hbm [thread:$0]  %s446, 640, %s443, %s431
        $region56: #{tpu_custom_call.1} parent=35 // pred_fallthru
          _
      $region36: #{tpu_custom_call.1} parent=5 // pred_fallthru
        _
      %p449 = scmp.le.s32.totalorder 2, %s22
      // Predicated region
      $region57: #{tpu_custom_call.1} parent=5 // pred_check
        %p450 = pneg %p449
      $region58: #{tpu_custom_call.1} parent=5 // pred_check_branch
        %452 = sbr.rel (%p450) target = $region60
      $region59: #{tpu_custom_call.1} parent=5 // pred_region
        %s453 = ssub.s32 %s22, 2
        // Predicated region
        $region61: #{tpu_custom_call.1} parent=59 // pred_check
          %p454 = pneg %p155
        $region62: #{tpu_custom_call.1} parent=59 // pred_check_branch
          %456 = sbr.rel (%p454) target = $region64
        $region63: #{tpu_custom_call.1} parent=59 // pred_region
          %s457 = sand.u32 %s140, 1
          %s458 = scalar_lea.sflag [#allocation4], %s457
          %s459 = sand.u32 %s140, 1
          %s460 = smul.addr %s459, 40
          %s461 = scalar_lea.vmem [#allocation10], %s460
          %462 = dma.done %s458, 640
        $region64: #{tpu_custom_call.1} parent=59 // pred_fallthru
          _
      $region60: #{tpu_custom_call.1} parent=5 // pred_fallthru
        _
    $region6: #{tpu_custom_call.1} parent=1 // loop_footer
      %s26 = sadd.s32 1, %s22
    $region7: #{tpu_custom_call.1} parent=1 // loop_footer_branch
      %21 = sbr.rel target = $region3
    $region8: #{tpu_custom_call.1} parent=1 // loop_exit
      _
    %463 = vsyncpa [#allocation3], 1
    %s464 = scalar_lea.sflag [#allocation3], 1
    %465 = vsyncpa %s464, 1
    %466 = vsyncpa [#allocation6], 1
    %s467 = scalar_lea.sflag [#allocation6], 1
    %468 = vsyncpa %s467, 1
    %469 = vsyncpa [#allocation9], 1
    %s470 = scalar_lea.sflag [#allocation9], 1
    %471 = vsyncpa %s470, 1
    %472 = vsyncpa [#allocation4], 1
    %s473 = scalar_lea.sflag [#allocation4], 1
    %474 = vsyncpa %s473, 1

</llo_original>
